<compile_context>
chip_gen: v7x
topology: tpu7x:2x2x1
jax: 0.10.0
libtpu: 0.0.40
codegen_flags: <defaults>
</compile_context>

<pallas_src>
import jax
import jax.numpy as jnp
from jax.experimental import pallas as pl
from jax.experimental.pallas import tpu as pltpu


_NEG_SLOPE = 0.01  # PyTorch F.leaky_relu default negative_slope


def _language_encoder_kernel(x_ref, w1_ref, b1_ref, w2_ref, b2_ref, out_ref):
    # fc1 on the MXU, f32 accumulation.
    h = jnp.dot(x_ref[...], w1_ref[...], preferred_element_type=jnp.float32)
    h = h + b1_ref[...]                      # bias add (VPU)
    h = jnp.maximum(h, _NEG_SLOPE * h)       # leaky_relu: one vmul + one vmax
    # fc2 on the MXU, f32 accumulation.
    y = jnp.dot(h, w2_ref[...], preferred_element_type=jnp.float32)
    y = y + b2_ref[...]
    out_ref[...] = y.astype(out_ref.dtype)


def _round_up(x, m):
    return (x + m - 1) // m * m


def language_encoder(x, w1, b1, w2, b2, *, block_b=2048, out_dtype=jnp.float32):
    """Fused fc1 -> leaky_relu -> fc2.

    x : (B, C); w1: (C, H); b1: (1, H); w2: (H, M); b2: (1, M)
    (weights stored [in, out], i.e. transpose of PyTorch nn.Linear.weight).
    Returns (B, M) in out_dtype.
    """
    B, C = x.shape
    H = w1.shape[1]
    M = w2.shape[1]

    # --- batch tiling ---------------------------------------------------------
    # TB multiple of 8. Aim for >= 4 grid steps when B is large enough so both
    # v7x TensorCores get work and the input/output DMA pipeline stays fed,
    # but never exceed block_b (which bounds the per-step VMEM working set).
    BP8 = _round_up(max(B, 1), 8)
    tb_target = max(8, _round_up(-(-BP8 // 4), 8))   # ceil(BP8/4) rounded to 8
    TB = _round_up(min(block_b, tb_target), 8)
    BP = _round_up(B, TB)
    if BP != B:
        x = jnp.pad(x, ((0, BP - B), (0, 0)))

    # Everything stays f32: the kernel is memory-bound, bf16 buys no speed
    # here and f32 keeps exact parity with the PyTorch reference.
    x = x.astype(jnp.float32)
    w1 = w1.astype(jnp.float32)
    b1 = b1.astype(jnp.float32)
    w2 = w2.astype(jnp.float32)
    b2 = b2.astype(jnp.float32)

    grid = (BP // TB,)

    out_itemsize = jnp.dtype(out_dtype).itemsize
    cost = pl.CostEstimate(
        flops=2 * BP * C * H + 2 * BP * H * M + 4 * BP * H,
        transcendentals=0,
        bytes_accessed=(x.size * 4 + w1.size * 4 + w2.size * 4
                        + b1.size * 4 + b2.size * 4 + BP * M * out_itemsize),
    )

    # Per-tile working set (double-buffered x + out tiles + resident weights)
    # is a few MB even at TB=8192 with these feature sizes, so no
    # vmem_limit_bytes override is needed on v5e/v6e/v7x.
    out = pl.pallas_call(
        _language_encoder_kernel,
        out_shape=jax.ShapeDtypeStruct((BP, M), out_dtype),
        grid_spec=pltpu.PrefetchScalarGridSpec(
            num_scalar_prefetch=0,
            grid=grid,
            in_specs=[
                # x streams per batch tile; weights/biases stay VMEM-resident.
                pl.BlockSpec((TB, C), lambda i: (i, 0)),
                pl.BlockSpec((C, H), lambda i: (0, 0)),
                pl.BlockSpec((1, H), lambda i: (0, 0)),
                pl.BlockSpec((H, M), lambda i: (0, 0)),
                pl.BlockSpec((1, M), lambda i: (0, 0)),
            ],
            out_specs=pl.BlockSpec((TB, M), lambda i: (i, 0)),
        ),
        compiler_params=pltpu.CompilerParams(
            dimension_semantics=("parallel",),
        ),
        cost_estimate=cost,
    )(x, w1, b1, w2, b2)

    # No separate slice kernel when the batch already tiled evenly.
    if BP == B:
        return out
    return out[:B]


def init_params(key, concept_size, hidden_size, message_size):
    """Deterministic init mimicking nn.Linear's uniform(-1/sqrt(fan_in), +)."""
    k1, k2, k3, k4 = jax.random.split(key, 4)
    bound1 = 1.0 / jnp.sqrt(concept_size)
    bound2 = 1.0 / jnp.sqrt(hidden_size)
    # Stored as [in, out] (transpose of PyTorch's [out, in]).
    w1 = jax.random.uniform(k1, (concept_size, hidden_size), jnp.float32,
                            -bound1, bound1)
    b1 = jax.random.uniform(k2, (1, hidden_size), jnp.float32, -bound1, bound1)
    w2 = jax.random.uniform(k3, (hidden_size, message_size), jnp.float32,
                            -bound2, bound2)
    b2 = jax.random.uniform(k4, (1, message_size), jnp.float32, -bound2, bound2)
    return w1, b1, w2, b2


def reference(x, w1, b1, w2, b2):
    h = x @ w1 + b1
    h = jnp.where(h >= 0.0, h, _NEG_SLOPE * h)
    return h @ w2 + b2


if __name__ == "__main__":
    concept_size, hidden_size, message_size = 16, 32, 8

    key = jax.random.PRNGKey(0)
    kx, kp = jax.random.split(key)
    w1, b1, w2, b2 = init_params(kp, concept_size, hidden_size, message_size)

    # Test 1: small batch, single grid point (B=4 -> padded to one 8-row tile).
    x = jax.random.normal(kx, (4, concept_size), jnp.float32)
    out = jax.block_until_ready(language_encoder(x, w1, b1, w2, b2))
    ref = reference(x, w1, b1, w2, b2)
    assert out.shape == (4, message_size)
    assert jnp.allclose(out, ref, atol=1e-4, rtol=1e-4), (
        float(jnp.max(jnp.abs(out - ref))))

    # Test 2: exercise batch tiling + padding (grid > 1, B not multiple of TB).
    x2 = jax.random.normal(jax.random.PRNGKey(1), (20, concept_size),
                           jnp.float32)
    out2 = jax.block_until_ready(
        language_encoder(x2, w1, b1, w2, b2, block_b=8))
    ref2 = reference(x2, w1, b1, w2, b2)
    assert out2.shape == (20, message_size)
    assert jnp.allclose(out2, ref2, atol=1e-4, rtol=1e-4), (
        float(jnp.max(jnp.abs(out2 - ref2))))

    # Test 3: larger batch, B an exact multiple of TB -> no post-call slice.
    x3 = jax.random.normal(jax.random.PRNGKey(2), (256, concept_size),
                           jnp.float32)
    out3 = jax.block_until_ready(language_encoder(x3, w1, b1, w2, b2))
    ref3 = reference(x3, w1, b1, w2, b2)
    assert out3.shape == (256, message_size)
    assert jnp.allclose(out3, ref3, atol=1e-4, rtol=1e-4), (
        float(jnp.max(jnp.abs(out3 - ref3))))

    print("KERNEL_OK")
</pallas_src>

<mosaic_0001>
module attributes {stable_mosaic.version = 11 : i64} {
  func.func @_language_encoder_kernel(%arg0: i32, %arg1: memref<8x16xf32, #tpu.memory_space<vmem>>, %arg2: memref<16x32xf32, #tpu.memory_space<vmem>>, %arg3: memref<1x32xf32, #tpu.memory_space<vmem>>, %arg4: memref<32x8xf32, #tpu.memory_space<vmem>>, %arg5: memref<1x8xf32, #tpu.memory_space<vmem>>, %arg6: memref<8x8xf32, #tpu.memory_space<vmem>>) attributes {dimension_semantics = [#tpu.dimension_semantics<parallel>], iteration_bounds = array<i64: 1>, scalar_prefetch = 0 : i64, scratch_operands = 0 : i64, tpu.core_type = #tpu.core_type<tc>, window_params = [{transform_indices = @transform_0, window_bounds = array<i64: 8, 16>}, {pipeline_mode = #tpu.pipeline_mode<synchronous>, transform_indices = @transform_1, window_bounds = array<i64: 16, 32>}, {pipeline_mode = #tpu.pipeline_mode<synchronous>, transform_indices = @transform_2, window_bounds = array<i64: 1, 32>}, {pipeline_mode = #tpu.pipeline_mode<synchronous>, transform_indices = @transform_3, window_bounds = array<i64: 32, 8>}, {pipeline_mode = #tpu.pipeline_mode<synchronous>, transform_indices = @transform_4, window_bounds = array<i64: 1, 8>}, {transform_indices = @transform_5, window_bounds = array<i64: 8, 8>}]} {
    %c0 = arith.constant 0 : index
    %c0_0 = arith.constant 0 : index
    %0 = vector.load %arg1[%c0, %c0_0] : memref<8x16xf32, #tpu.memory_space<vmem>>, vector<8x16xf32>
    %c0_1 = arith.constant 0 : index
    %c0_2 = arith.constant 0 : index
    %1 = vector.load %arg2[%c0_1, %c0_2] : memref<16x32xf32, #tpu.memory_space<vmem>>, vector<16x32xf32>
    %cst = arith.constant dense<0.000000e+00> : vector<8x32xf32>
    %2 = tpu.matmul %0, %1, %cst {dimension_numbers = #tpu.dot_dimension_numbers<[1], [0], [0], [1], [0, 0, 1, 1], [], []>} : vector<8x16xf32>, vector<16x32xf32>, vector<8x32xf32> -> vector<8x32xf32>
    %c0_3 = arith.constant 0 : index
    %c0_4 = arith.constant 0 : index
    %3 = vector.load %arg3[%c0_3, %c0_4] : memref<1x32xf32, #tpu.memory_space<vmem>>, vector<1x32xf32>
    %4 = vector.broadcast %3 : vector<1x32xf32> to vector<8x32xf32>
    %5 = arith.addf %2, %4 : vector<8x32xf32>
    %cst_5 = arith.constant 0.00999999977 : f32
    %6 = vector.broadcast %cst_5 : f32 to vector<8x32xf32>
    %7 = arith.mulf %6, %5 : vector<8x32xf32>
    %8 = arith.maximumf %5, %7 : vector<8x32xf32>
    %c0_6 = arith.constant 0 : index
    %c0_7 = arith.constant 0 : index
    %9 = vector.load %arg4[%c0_6, %c0_7] : memref<32x8xf32, #tpu.memory_space<vmem>>, vector<32x8xf32>
    %cst_8 = arith.constant dense<0.000000e+00> : vector<8x8xf32>
    %10 = tpu.matmul %8, %9, %cst_8 {dimension_numbers = #tpu.dot_dimension_numbers<[1], [0], [0], [1], [0, 0, 1, 1], [], []>} : vector<8x32xf32>, vector<32x8xf32>, vector<8x8xf32> -> vector<8x8xf32>
    %c0_9 = arith.constant 0 : index
    %c0_10 = arith.constant 0 : index
    %11 = vector.load %arg5[%c0_9, %c0_10] : memref<1x8xf32, #tpu.memory_space<vmem>>, vector<1x8xf32>
    %12 = vector.broadcast %11 : vector<1x8xf32> to vector<8x8xf32>
    %13 = arith.addf %10, %12 : vector<8x8xf32>
    %c0_11 = arith.constant 0 : index
    %c0_12 = arith.constant 0 : index
    %14 = vector.load %arg6[%c0_11, %c0_12] : memref<8x8xf32, #tpu.memory_space<vmem>>, vector<8x8xf32>
    tpu.vector_store %arg6[%c0_11, %c0_12], %13 {strides = array<i32>} : memref<8x8xf32, #tpu.memory_space<vmem>>, vector<8x8xf32>,
    return
  }
  func.func @transform_0(%arg0: i32) -> (i32, i32) {
    %c0_i32 = arith.constant 0 : i32
    %c0_i32_0 = arith.constant 0 : i32
    return %arg0, %c0_i32 : i32, i32
  }
  func.func @transform_1(%arg0: i32) -> (i32, i32) {
    %c0_i32 = arith.constant 0 : i32
    %c0_i32_0 = arith.constant 0 : i32
    %c0_i32_1 = arith.constant 0 : i32
    return %c0_i32, %c0_i32_0 : i32, i32
  }
  func.func @transform_2(%arg0: i32) -> (i32, i32) {
    %c0_i32 = arith.constant 0 : i32
    %c0_i32_0 = arith.constant 0 : i32
    %c0_i32_1 = arith.constant 0 : i32
    return %c0_i32, %c0_i32_0 : i32, i32
  }
  func.func @transform_3(%arg0: i32) -> (i32, i32) {
    %c0_i32 = arith.constant 0 : i32
    %c0_i32_0 = arith.constant 0 : i32
    %c0_i32_1 = arith.constant 0 : i32
    return %c0_i32, %c0_i32_0 : i32, i32
  }
  func.func @transform_4(%arg0: i32) -> (i32, i32) {
    %c0_i32 = arith.constant 0 : i32
    %c0_i32_0 = arith.constant 0 : i32
    %c0_i32_1 = arith.constant 0 : i32
    return %c0_i32, %c0_i32_0 : i32, i32
  }
  func.func @transform_5(%arg0: i32) -> (i32, i32) {
    %c0_i32 = arith.constant 0 : i32
    %c0_i32_0 = arith.constant 0 : i32
    return %arg0, %c0_i32 : i32, i32
  }
}

</mosaic_0001>

<llo_original>
// kernel: tpu_custom_call.1
$region0: #{tpu_custom_call.1}
  #allocation0 [shape = 'u32[]', space=smem, size = 0x4, offset = 0x4, fixed_abs, tag = 'smem constant byte address 0x4 - core index']
  #allocation1 [shape = 'u32[144,128]{1,0:T(1,128)}', space=vmem, size = 0x12000, scoped, tag = 'internal scratch']
  %s0 = inlined_call_operand.vmem [shape: f32[8,16], index: 0, kind: input, shape index: {}]
  %s1 = inlined_call_operand.vmem [shape: f32[16,32], index: 1, kind: input, shape index: {}]
  %s2 = inlined_call_operand.vmem [shape: f32[1,32], index: 2, kind: input, shape index: {}]
  %s3 = inlined_call_operand.vmem [shape: f32[32,8], index: 3, kind: input, shape index: {}]
  %s4 = inlined_call_operand.vmem [shape: f32[1,8], index: 4, kind: input, shape index: {}]
  %s5 = inlined_call_operand.hbm [shape: f32[8,8], index: 5, kind: output, shape index: {}]
  %s6 = sld [smem:[#allocation0]]
  $region30: #{tpu_custom_call.1} parent=0
    _
  %s8 = ssub.s32 1, %s6
  %s9 = scalar_select 0, %s8, %s6
  $region1: #{tpu_custom_call.1} parent=0
    #allocation2 [shape = 'u8[4096]{0}', space=vmem, size = 0x1000, scoped, tag = 'output window, operand 0, single buffered']
    #allocation3 [shape = 's32[1]{0}', space=sflag, size = 0x4, scoped, tag = 'scoped memory for tpu_custom_call.1']
    %10 = vsyncpa [#allocation3], 0
    // Predicated region
    $region2: #{tpu_custom_call.1} parent=1 // pred_check
      _
    $region3: #{tpu_custom_call.1} parent=1 // pred_check_branch
      %12 = sbr.rel (0) target = $region5
    $region4: #{tpu_custom_call.1} parent=1 // pred_region
      _
    $region5: #{tpu_custom_call.1} parent=1 // pred_fallthru
      _
    // Predicated region
    $region6: #{tpu_custom_call.1} parent=1 // pred_check
      _
    $region7: #{tpu_custom_call.1} parent=1 // pred_check_branch
      %14 = sbr.rel (0) target = $region9
    $region8: #{tpu_custom_call.1} parent=1 // pred_region
      _
    $region9: #{tpu_custom_call.1} parent=1 // pred_fallthru
      _
    // Predicated region
    $region10: #{tpu_custom_call.1} parent=1 // pred_check
      _
    $region11: #{tpu_custom_call.1} parent=1 // pred_check_branch
      %16 = sbr.rel (0) target = $region13
    $region12: #{tpu_custom_call.1} parent=1 // pred_region
      _
    $region13: #{tpu_custom_call.1} parent=1 // pred_fallthru
      _
    // Predicated region
    $region14: #{tpu_custom_call.1} parent=1 // pred_check
      _
    $region15: #{tpu_custom_call.1} parent=1 // pred_check_branch
      %18 = sbr.rel (0) target = $region17
    $region16: #{tpu_custom_call.1} parent=1 // pred_region
      _
    $region17: #{tpu_custom_call.1} parent=1 // pred_fallthru
      _
    // Predicated region
    $region18: #{tpu_custom_call.1} parent=1 // pred_check
      _
    $region19: #{tpu_custom_call.1} parent=1 // pred_check_branch
      %20 = sbr.rel (0) target = $region21
    $region20: #{tpu_custom_call.1} parent=1 // pred_region
      _
    $region21: #{tpu_custom_call.1} parent=1 // pred_fallthru
      _
    %v21 = vld [vmem:[%s0] sm:$0xff]
    %v22 = vld [vmem:[%s1] sm:$0xff]
    %v23 = vld [vmem:[%s1 + $0x8] sm:$0xff]
    %v24 = vld [vmem:[%s2] sm:$0x1]
    %v26 = vlaneseq
    %v27 = vshrl.u32 %v26, 7
    %v28 = vsub.s32 0, %v27
    %v29 = vrot.slane %v24, %v28
    %vm31 = vcmask 130048
    %v33 = vsel %vm31, %v21, 0
    %35 = vmatprep.subr.mxu0 0.0
    %36 = vmatpush1.msra.mxu0 %v22
    %37 = vmatprep.subr.mxu0 0.0
    %38 = vmatpush1.msra.mxu0 %v23
    %39 = vmatprep.subr.mxu0 0.0
    %40 = vmatpush1.msra.mxu0 0.0
    %41 = vmatprep.subr.mxu0 0.0
    %42 = vmatpush1.msra.mxu0 0.0
    %43 = vmatprep.subr.mxu0 0.0
    %44 = vmatpush1.msra.mxu0 0.0
    %45 = vmatprep.subr.mxu0 0.0
    %46 = vmatpush1.msra.mxu0 0.0
    %47 = vmatprep.subr.mxu0 0.0
    %48 = vmatpush1.msra.mxu0 0.0
    %49 = vmatprep.subr.mxu0 0.0
    %50 = vmatpush1.msra.mxu0 0.0
    %51 = vmatprep.subr.mxu0 0.0
    %52 = vmatpush1.msra.mxu0 0.0
    %53 = vmatprep.subr.mxu0 0.0
    %54 = vmatpush1.msra.mxu0 0.0
    %55 = vmatprep.subr.mxu0 0.0
    %56 = vmatpush1.msra.mxu0 0.0
    %57 = vmatprep.subr.mxu0 0.0
    %58 = vmatpush1.msra.mxu0 0.0
    %59 = vmatprep.subr.mxu0 0.0
    %60 = vmatpush1.msra.mxu0 0.0
    %61 = vmatprep.subr.mxu0 0.0
    %62 = vmatpush1.msra.mxu0 0.0
    %63 = vmatprep.subr.mxu0 0.0
    %64 = vmatpush1.msra.mxu0 0.0
    %65 = vmatprep.subr.mxu0 0.0
    %66 = vmatpush1.msra.mxu0 0.0
    %67 = vmatprep.subr.mxu0 0.0
    %68 = vmatpush1.msra.mxu0 0.0
    %69 = vmatprep.subr.mxu0 0.0
    %70 = vmatpush1.msra.mxu0 0.0
    %71 = vmatprep.subr.mxu0 0.0
    %72 = vmatpush1.msra.mxu0 0.0
    %73 = vmatprep.subr.mxu0 0.0
    %74 = vmatpush1.msra.mxu0 0.0
    %75 = vmatprep.subr.mxu0 0.0
    %76 = vmatpush1.msra.mxu0 0.0
    %77 = vmatprep.subr.mxu0 0.0
    %78 = vmatpush1.msra.mxu0 0.0
    %79 = vmatprep.subr.mxu0 0.0
    %80 = vmatpush1.msra.mxu0 0.0
    %81 = vmatprep.subr.mxu0 0.0
    %82 = vmatpush1.msra.mxu0 0.0
    %83 = vmatprep.subr.mxu0 0.0
    %84 = vmatpush1.msra.mxu0 0.0
    %85 = vmatprep.subr.mxu0 0.0
    %86 = vmatpush1.msra.mxu0 0.0
    %87 = vmatprep.subr.mxu0 0.0
    %88 = vmatpush1.msra.mxu0 0.0
    %89 = vmatprep.subr.mxu0 0.0
    %90 = vmatpush1.msra.mxu0 0.0
    %91 = vmatprep.subr.mxu0 0.0
    %92 = vmatpush1.msra.mxu0 0.0
    %93 = vmatprep.subr.mxu0 0.0
    %94 = vmatpush1.msra.mxu0 0.0
    %95 = vmatprep.subr.mxu0 0.0
    %96 = vmatpush1.msra.mxu0 0.0
    %97 = vmatprep.subr.mxu0 0.0
    %98 = vmatpush1.msra.mxu0 0.0
    %99 = vmatprep.mubr.f32.mxu0 0.0
    %100 = vmatmul.mubr.f32.gmra.mrb[0].mxu0 %v33
    %v101 = vpop.f32.mrb[0].mxu0
    %v102 = vadd.f32 %v29, %v101
    %v103 = vpop.f32.mrb[0].mxu0
    %104 = vdwg.mxu0
    %v105 = vmul.f32 %v102, 0.01
    %v106 = vmax.f32 %v102, %v105
    %v107 = vld [vmem:[%s3] sm:$0xff]
    %v108 = vld [vmem:[%s3 + $0x8] sm:$0xff]
    %v109 = vld [vmem:[%s3 + $0x10] sm:$0xff]
    %v110 = vld [vmem:[%s3 + $0x18] sm:$0xff]
    %v111 = vld [vmem:[%s4] sm:$0x1]
    %v113 = vlaneseq
    %v114 = vshrl.u32 %v113, 7
    %v115 = vsub.s32 0, %v114
    %v116 = vrot.slane %v111, %v115
    %vm118 = vcmask 261120
    %v120 = vsel %vm118, %v106, 0
    %122 = vmatprep.subr.mxu0 0.0
    %123 = vmatpush1.msra.mxu0 %v107
    %124 = vmatprep.subr.mxu0 0.0
    %125 = vmatpush1.msra.mxu0 %v108
    %126 = vmatprep.subr.mxu0 0.0
    %127 = vmatpush1.msra.mxu0 %v109
    %128 = vmatprep.subr.mxu0 0.0
    %129 = vmatpush1.msra.mxu0 %v110
    %130 = vmatprep.subr.mxu0 0.0
    %131 = vmatpush1.msra.mxu0 0.0
    %132 = vmatprep.subr.mxu0 0.0
    %133 = vmatpush1.msra.mxu0 0.0
    %134 = vmatprep.subr.mxu0 0.0
    %135 = vmatpush1.msra.mxu0 0.0
    %136 = vmatprep.subr.mxu0 0.0
    %137 = vmatpush1.msra.mxu0 0.0
    %138 = vmatprep.subr.mxu0 0.0
    %139 = vmatpush1.msra.mxu0 0.0
    %140 = vmatprep.subr.mxu0 0.0
    %141 = vmatpush1.msra.mxu0 0.0
    %142 = vmatprep.subr.mxu0 0.0
    %143 = vmatpush1.msra.mxu0 0.0
    %144 = vmatprep.subr.mxu0 0.0
    %145 = vmatpush1.msra.mxu0 0.0
    %146 = vmatprep.subr.mxu0 0.0
    %147 = vmatpush1.msra.mxu0 0.0
    %148 = vmatprep.subr.mxu0 0.0
    %149 = vmatpush1.msra.mxu0 0.0
    %150 = vmatprep.subr.mxu0 0.0
    %151 = vmatpush1.msra.mxu0 0.0
    %152 = vmatprep.subr.mxu0 0.0
    %153 = vmatpush1.msra.mxu0 0.0
    %154 = vmatprep.subr.mxu0 0.0
    %155 = vmatpush1.msra.mxu0 0.0
    %156 = vmatprep.subr.mxu0 0.0
    %157 = vmatpush1.msra.mxu0 0.0
    %158 = vmatprep.subr.mxu0 0.0
    %159 = vmatpush1.msra.mxu0 0.0
    %160 = vmatprep.subr.mxu0 0.0
    %161 = vmatpush1.msra.mxu0 0.0
    %162 = vmatprep.subr.mxu0 0.0
    %163 = vmatpush1.msra.mxu0 0.0
    %164 = vmatprep.subr.mxu0 0.0
    %165 = vmatpush1.msra.mxu0 0.0
    %166 = vmatprep.subr.mxu0 0.0
    %167 = vmatpush1.msra.mxu0 0.0
    %168 = vmatprep.subr.mxu0 0.0
    %169 = vmatpush1.msra.mxu0 0.0
    %170 = vmatprep.subr.mxu0 0.0
    %171 = vmatpush1.msra.mxu0 0.0
    %172 = vmatprep.subr.mxu0 0.0
    %173 = vmatpush1.msra.mxu0 0.0
    %174 = vmatprep.subr.mxu0 0.0
    %175 = vmatpush1.msra.mxu0 0.0
    %176 = vmatprep.subr.mxu0 0.0
    %177 = vmatpush1.msra.mxu0 0.0
    %178 = vmatprep.subr.mxu0 0.0
    %179 = vmatpush1.msra.mxu0 0.0
    %180 = vmatprep.subr.mxu0 0.0
    %181 = vmatpush1.msra.mxu0 0.0
    %182 = vmatprep.subr.mxu0 0.0
    %183 = vmatpush1.msra.mxu0 0.0
    %184 = vmatprep.subr.mxu0 0.0
    %185 = vmatpush1.msra.mxu0 0.0
    %186 = vmatprep.mubr.f32.mxu0 0.0
    %187 = vmatmul.mubr.f32.gmra.mrb[0].mxu0 %v120
    %v188 = vpop.f32.mrb[0].mxu0
    %v189 = vadd.f32 %v116, %v188
    %v190 = vpop.f32.mrb[0].mxu0
    %191 = vdwg.mxu0
    %vm192 = vcmask 64512
    %193 = vst.msk [vmem:[#allocation2] sm:$0xff] %vm192, %v189
    // Predicated region
    $region22: #{tpu_custom_call.1} parent=1 // pred_check
      _
    $region23: #{tpu_custom_call.1} parent=1 // pred_check_branch
      %195 = sbr.rel (0) target = $region25
    $region24: #{tpu_custom_call.1} parent=1 // pred_region
      %s197 = ssub.s32 128, 128
      %198 = vsyncadd [#allocation3], %s197
      %s200 = sshll.u32 [#allocation2], 4
      %s201 = int_to_ptr.vmem [resolvable:$true] %s200
      %203 = dma.vmem_to_hbm [thread:$0]  %s201, 128, %s5, [#allocation3]
    $region25: #{tpu_custom_call.1} parent=1 // pred_fallthru
      _
    // Predicated region
    $region26: #{tpu_custom_call.1} parent=1 // pred_check
      _
    $region27: #{tpu_custom_call.1} parent=1 // pred_check_branch
      %205 = sbr.rel (0) target = $region29
    $region28: #{tpu_custom_call.1} parent=1 // pred_region
      %206 = dma.done [#allocation3], 128
    $region29: #{tpu_custom_call.1} parent=1 // pred_fallthru
      _
    %207 = vsyncpa [#allocation3], 1

</llo_original>
